<compile_context>
chip_gen: v6e
topology: v6e:2x2x1
jax: 0.10.0
libtpu: 0.0.40
codegen_flags: <defaults>
</compile_context>

<pallas_src>
import jax
import jax.numpy as jnp
from jax.experimental import pallas as pl
from jax.experimental.pallas import tpu as pltpu

VOCAB_SIZE = 6
EMBEDDING_DIM = 10
INPUT_LENGTH = 5

_SUBLANE = 8                 # sublane granularity for the token (row) axis
_MAX_TOKENS_PER_BLOCK = 2048 # per-step tile; ~2x80 KiB double-buffered VMEM, fits everywhere
_SPLIT_THRESHOLD = 1024      # above this, force >= 2 grid steps (v7x megacore)
_PALLAS_MIN_TOKENS = 256     # below this, XLA gather beats the pallas_call fixed cost


def _round_up(x, m):
    return ((x + m - 1) // m) * m


def _block_plan(n):
    """Pick (tokens_per_block, padded_n) adaptively for n flattened tokens."""
    n8 = _round_up(max(n, 1), _SUBLANE)
    if n8 <= _SPLIT_THRESHOLD:
        return n8, n8                                  # single block, minimal padding
    tb = min(_MAX_TOKENS_PER_BLOCK, _round_up(pl.cdiv(n8, 2), _SUBLANE))
    return tb, _round_up(n8, tb)                       # >= 2 blocks for large N


def _embedding_select_kernel(tok_ref, emb_ref, out_ref):
    """One grid step: gather embeddings for a block of tokens.

    tok_ref : (tb, 1)  int32   token ids (tokens on the sublane axis)
    emb_ref : (V, D)           resident embedding table (tiny)
    out_ref : (tb, D)          embedded rows, written directly in final layout
    """
    toks = tok_ref[...]                                      # (tb, 1)
    acc = jnp.zeros(out_ref.shape, dtype=out_ref.dtype)      # (tb, D)
    # Vocab is a compile-time constant (6): fully unrolled VPU compare+select.
    # Exact row copies -> bit-exact result in the table's dtype.
    for v in range(emb_ref.shape[0]):
        acc = jnp.where(toks == v, emb_ref[v:v + 1, :], acc)
    out_ref[...] = acc


def embedding_lookup(input_seq, embedding_matrix, *, use_pallas=None):
    """Pallas equivalent of `embedding_matrix[input_seq]`.

    input_seq        : int array of any shape, e.g. (L,) or (B, L)
    embedding_matrix : (VOCAB_SIZE, EMBEDDING_DIM)
    returns          : input_seq.shape + (EMBEDDING_DIM,), dtype of the table
    """
    v, d = embedding_matrix.shape
    flat = input_seq.reshape(-1).astype(jnp.int32)
    n = flat.shape[0]

    if use_pallas is None:
        use_pallas = n >= _PALLAS_MIN_TOKENS
    if not use_pallas:
        # Tiny lookup: pallas_call launch/DMA prologue costs more than the gather.
        return embedding_matrix[input_seq]

    tb, n_pad = _block_plan(n)
    toks = jnp.pad(flat, (0, n_pad - n)).reshape(n_pad, 1)   # pad id 0; rows sliced off

    out = pl.pallas_call(
        _embedding_select_kernel,
        out_shape=jax.ShapeDtypeStruct((n_pad, d), embedding_matrix.dtype),
        grid_spec=pltpu.PrefetchScalarGridSpec(
            num_scalar_prefetch=0,
            grid=(n_pad // tb,),
            in_specs=[
                pl.BlockSpec((tb, 1), lambda i: (i, 0)),     # token block
                pl.BlockSpec((v, d), lambda i: (0, 0)),      # resident table (240 B)
            ],
            out_specs=pl.BlockSpec((tb, d), lambda i: (i, 0)),
        ),
        compiler_params=pltpu.CompilerParams(
            dimension_semantics=("parallel",)),
    )(toks, embedding_matrix)

    return out[:n].reshape(input_seq.shape + (d,))


if __name__ == "__main__":
    key = jax.random.PRNGKey(0)
    k_seq, k_emb, k_big = jax.random.split(key, 3)

    embedding_matrix = jax.random.normal(
        k_emb, (VOCAB_SIZE, EMBEDDING_DIM), jnp.float32)

    # 1) Module's exact forward signature: (5,) -> (5, 10). Auto path (XLA gather).
    input_seq = jax.random.randint(k_seq, (INPUT_LENGTH,), 0, VOCAB_SIZE,
                                   dtype=jnp.int32)
    out_small = jax.block_until_ready(embedding_lookup(input_seq, embedding_matrix))
    assert out_small.shape == (INPUT_LENGTH, EMBEDDING_DIM), out_small.shape
    assert jnp.array_equal(out_small, embedding_matrix[input_seq])

    # 2) Force the Pallas kernel at the nominal tiny shape (single 8-row block).
    out_small_k = jax.block_until_ready(
        embedding_lookup(input_seq, embedding_matrix, use_pallas=True))
    assert out_small_k.shape == (INPUT_LENGTH, EMBEDDING_DIM), out_small_k.shape
    assert jnp.array_equal(out_small_k, embedding_matrix[input_seq])

    # 3) Bulk lookup: auto-selects the Pallas path, multi-block "parallel" grid.
    big_seq = jax.random.randint(k_big, (4, 512), 0, VOCAB_SIZE, dtype=jnp.int32)
    out_big = jax.block_until_ready(embedding_lookup(big_seq, embedding_matrix))
    assert out_big.shape == (4, 512, EMBEDDING_DIM), out_big.shape
    assert jnp.array_equal(out_big, embedding_matrix[big_seq])

    print("KERNEL_OK")
</pallas_src>

<mosaic_0001>
module attributes {stable_mosaic.version = 11 : i64} {
  func.func @_embedding_select_kernel(%arg0: i32, %arg1: memref<8x1xi32, #tpu.memory_space<vmem>>, %arg2: memref<6x10xf32, #tpu.memory_space<vmem>>, %arg3: memref<8x10xf32, #tpu.memory_space<vmem>>) attributes {dimension_semantics = [#tpu.dimension_semantics<parallel>], iteration_bounds = array<i64: 1>, scalar_prefetch = 0 : i64, scratch_operands = 0 : i64, tpu.core_type = #tpu.core_type<tc>, window_params = [{transform_indices = @transform_0, window_bounds = array<i64: 8, 1>}, {pipeline_mode = #tpu.pipeline_mode<synchronous>, transform_indices = @transform_1, window_bounds = array<i64: 6, 10>}, {transform_indices = @transform_2, window_bounds = array<i64: 8, 10>}]} {
    %c0 = arith.constant 0 : index
    %c0_0 = arith.constant 0 : index
    %0 = vector.load %arg1[%c0, %c0_0] : memref<8x1xi32, #tpu.memory_space<vmem>>, vector<8x1xi32>
    %cst = arith.constant 0.000000e+00 : f32
    %1 = vector.broadcast %cst : f32 to vector<8x10xf32>
    %c0_i32 = arith.constant 0 : i32
    %2 = vector.broadcast %c0_i32 : i32 to vector<8x1xi32>
    %3 = arith.cmpi eq, %0, %2 : vector<8x1xi32>
    %c0_1 = arith.constant 0 : index
    %c0_2 = arith.constant 0 : index
    %4 = vector.load %arg2[%c0_1, %c0_2] : memref<6x10xf32, #tpu.memory_space<vmem>>, vector<1x10xf32>
    %5 = vector.shape_cast %3 : vector<8x1xi1> to vector<8x1xi1>
    %6 = vector.broadcast %5 : vector<8x1xi1> to vector<8x10xi1>
    %7 = vector.shape_cast %4 : vector<1x10xf32> to vector<1x10xf32>
    %8 = vector.broadcast %7 : vector<1x10xf32> to vector<8x10xf32>
    %9 = arith.select %6, %8, %1 : vector<8x10xi1>, vector<8x10xf32>
    %c1_i32 = arith.constant 1 : i32
    %10 = vector.broadcast %c1_i32 : i32 to vector<8x1xi32>
    %11 = arith.cmpi eq, %0, %10 : vector<8x1xi32>
    %c1 = arith.constant 1 : index
    %c0_3 = arith.constant 0 : index
    %12 = vector.load %arg2[%c1, %c0_3] : memref<6x10xf32, #tpu.memory_space<vmem>>, vector<1x10xf32>
    %13 = vector.shape_cast %11 : vector<8x1xi1> to vector<8x1xi1>
    %14 = vector.broadcast %13 : vector<8x1xi1> to vector<8x10xi1>
    %15 = vector.shape_cast %12 : vector<1x10xf32> to vector<1x10xf32>
    %16 = vector.broadcast %15 : vector<1x10xf32> to vector<8x10xf32>
    %17 = arith.select %14, %16, %9 : vector<8x10xi1>, vector<8x10xf32>
    %c2_i32 = arith.constant 2 : i32
    %18 = vector.broadcast %c2_i32 : i32 to vector<8x1xi32>
    %19 = arith.cmpi eq, %0, %18 : vector<8x1xi32>
    %c2 = arith.constant 2 : index
    %c0_4 = arith.constant 0 : index
    %20 = vector.load %arg2[%c2, %c0_4] : memref<6x10xf32, #tpu.memory_space<vmem>>, vector<1x10xf32>
    %21 = vector.shape_cast %19 : vector<8x1xi1> to vector<8x1xi1>
    %22 = vector.broadcast %21 : vector<8x1xi1> to vector<8x10xi1>
    %23 = vector.shape_cast %20 : vector<1x10xf32> to vector<1x10xf32>
    %24 = vector.broadcast %23 : vector<1x10xf32> to vector<8x10xf32>
    %25 = arith.select %22, %24, %17 : vector<8x10xi1>, vector<8x10xf32>
    %c3_i32 = arith.constant 3 : i32
    %26 = vector.broadcast %c3_i32 : i32 to vector<8x1xi32>
    %27 = arith.cmpi eq, %0, %26 : vector<8x1xi32>
    %c3 = arith.constant 3 : index
    %c0_5 = arith.constant 0 : index
    %28 = vector.load %arg2[%c3, %c0_5] : memref<6x10xf32, #tpu.memory_space<vmem>>, vector<1x10xf32>
    %29 = vector.shape_cast %27 : vector<8x1xi1> to vector<8x1xi1>
    %30 = vector.broadcast %29 : vector<8x1xi1> to vector<8x10xi1>
    %31 = vector.shape_cast %28 : vector<1x10xf32> to vector<1x10xf32>
    %32 = vector.broadcast %31 : vector<1x10xf32> to vector<8x10xf32>
    %33 = arith.select %30, %32, %25 : vector<8x10xi1>, vector<8x10xf32>
    %c4_i32 = arith.constant 4 : i32
    %34 = vector.broadcast %c4_i32 : i32 to vector<8x1xi32>
    %35 = arith.cmpi eq, %0, %34 : vector<8x1xi32>
    %c4 = arith.constant 4 : index
    %c0_6 = arith.constant 0 : index
    %36 = vector.load %arg2[%c4, %c0_6] : memref<6x10xf32, #tpu.memory_space<vmem>>, vector<1x10xf32>
    %37 = vector.shape_cast %35 : vector<8x1xi1> to vector<8x1xi1>
    %38 = vector.broadcast %37 : vector<8x1xi1> to vector<8x10xi1>
    %39 = vector.shape_cast %36 : vector<1x10xf32> to vector<1x10xf32>
    %40 = vector.broadcast %39 : vector<1x10xf32> to vector<8x10xf32>
    %41 = arith.select %38, %40, %33 : vector<8x10xi1>, vector<8x10xf32>
    %c5_i32 = arith.constant 5 : i32
    %42 = vector.broadcast %c5_i32 : i32 to vector<8x1xi32>
    %43 = arith.cmpi eq, %0, %42 : vector<8x1xi32>
    %c5 = arith.constant 5 : index
    %c0_7 = arith.constant 0 : index
    %44 = vector.load %arg2[%c5, %c0_7] : memref<6x10xf32, #tpu.memory_space<vmem>>, vector<1x10xf32>
    %45 = vector.shape_cast %43 : vector<8x1xi1> to vector<8x1xi1>
    %46 = vector.broadcast %45 : vector<8x1xi1> to vector<8x10xi1>
    %47 = vector.shape_cast %44 : vector<1x10xf32> to vector<1x10xf32>
    %48 = vector.broadcast %47 : vector<1x10xf32> to vector<8x10xf32>
    %49 = arith.select %46, %48, %41 : vector<8x10xi1>, vector<8x10xf32>
    %c0_8 = arith.constant 0 : index
    %c0_9 = arith.constant 0 : index
    %50 = vector.load %arg3[%c0_8, %c0_9] : memref<8x10xf32, #tpu.memory_space<vmem>>, vector<8x10xf32>
    tpu.vector_store %arg3[%c0_8, %c0_9], %49 {strides = array<i32>} : memref<8x10xf32, #tpu.memory_space<vmem>>, vector<8x10xf32>,
    return
  }
  func.func @transform_0(%arg0: i32) -> (i32, i32) {
    %c0_i32 = arith.constant 0 : i32
    %c0_i32_0 = arith.constant 0 : i32
    return %arg0, %c0_i32 : i32, i32
  }
  func.func @transform_1(%arg0: i32) -> (i32, i32) {
    %c0_i32 = arith.constant 0 : i32
    %c0_i32_0 = arith.constant 0 : i32
    %c0_i32_1 = arith.constant 0 : i32
    return %c0_i32, %c0_i32_0 : i32, i32
  }
  func.func @transform_2(%arg0: i32) -> (i32, i32) {
    %c0_i32 = arith.constant 0 : i32
    %c0_i32_0 = arith.constant 0 : i32
    return %arg0, %c0_i32 : i32, i32
  }
}

</mosaic_0001>

<llo_original>
// kernel: tpu_custom_call.1
$region0: #{tpu_custom_call.1}
  #allocation0 [shape = 'u32[]', space=smem, size = 0x4, offset = 0x4, fixed_abs, tag = 'smem constant byte address 0x4 - core index']
  #allocation1 [shape = 'u32[144,128]{1,0:T(1,128)}', space=vmem, size = 0x12000, scoped, tag = 'internal scratch']
  %s0 = inlined_call_operand.vmem [shape: s32[8,1], index: 0, kind: input, shape index: {}]
  %s1 = inlined_call_operand.vmem [shape: f32[6,10], index: 1, kind: input, shape index: {}]
  %s2 = inlined_call_operand.hbm [shape: f32[8,10], index: 2, kind: output, shape index: {}]
  %s3 = sld [smem:[#allocation0]]
  $region18: #{tpu_custom_call.1} parent=0
    _
  %s5 = ssub.s32 1, %s3
  %s6 = scalar_select 0, %s5, %s3
  $region1: #{tpu_custom_call.1} parent=0
    #allocation2 [shape = 'u8[4096]{0}', space=vmem, size = 0x1000, scoped, tag = 'output window, operand 0, single buffered']
    #allocation3 [shape = 's32[1]{0}', space=sflag, size = 0x4, scoped, tag = 'scoped memory for tpu_custom_call.1']
    %7 = vsyncpa [#allocation3], 0
    // Predicated region
    $region2: #{tpu_custom_call.1} parent=1 // pred_check
      _
    $region3: #{tpu_custom_call.1} parent=1 // pred_check_branch
      %9 = sbr.rel (0) target = $region5
    $region4: #{tpu_custom_call.1} parent=1 // pred_region
      _
    $region5: #{tpu_custom_call.1} parent=1 // pred_fallthru
      _
    // Predicated region
    $region6: #{tpu_custom_call.1} parent=1 // pred_check
      _
    $region7: #{tpu_custom_call.1} parent=1 // pred_check_branch
      %11 = sbr.rel (0) target = $region9
    $region8: #{tpu_custom_call.1} parent=1 // pred_region
      _
    $region9: #{tpu_custom_call.1} parent=1 // pred_fallthru
      _
    %v12 = vld [vmem:[%s0] sm:$0xff]
    %vm13 = vcmp.eq.s32.totalorder %v12, 0
    %v14 = vld [vmem:[%s1] sm:$0x1]
    %v15 = vsel %vm13, 1, 0
    %16 = vset.pattern.permute.xlu0 0
    %17 = vperm.xlu0 %16, %v15
    %v18 = vpop.permute.xlu0 %17
    %vm19 = vcmp.eq.s32.totalorder %v18, 1
    %v20 = vlaneseq
    %v21 = vshrl.u32 %v20, 7
    %v22 = vsub.s32 0, %v21
    %v23 = vrot.slane %v14, %v22
    %v24 = vsel %vm19, %v23, 0.0
    %vm25 = vcmp.eq.s32.totalorder %v12, 1
    %v26 = vld [vmem:[%s1 + $0x1] sm:$0x1]
    %v27 = vsel %vm25, 1, 0
    %28 = vset.pattern.permute.xlu0 0
    %29 = vperm.xlu0 %28, %v27
    %v30 = vpop.permute.xlu0 %29
    %vm31 = vcmp.eq.s32.totalorder %v30, 1
    %v32 = vlaneseq
    %v33 = vshrl.u32 %v32, 7
    %v34 = vsub.s32 0, %v33
    %v35 = vrot.slane %v26, %v34
    %v36 = vsel %vm31, %v35, %v24
    %vm37 = vcmp.eq.s32.totalorder %v12, 2
    %v38 = vld [vmem:[%s1 + $0x2] sm:$0x1]
    %v39 = vsel %vm37, 1, 0
    %40 = vset.pattern.permute.xlu0 0
    %41 = vperm.xlu0 %40, %v39
    %v42 = vpop.permute.xlu0 %41
    %vm43 = vcmp.eq.s32.totalorder %v42, 1
    %v44 = vlaneseq
    %v45 = vshrl.u32 %v44, 7
    %v46 = vsub.s32 0, %v45
    %v47 = vrot.slane %v38, %v46
    %v48 = vsel %vm43, %v47, %v36
    %vm49 = vcmp.eq.s32.totalorder %v12, 3
    %v50 = vld [vmem:[%s1 + $0x3] sm:$0x1]
    %v51 = vsel %vm49, 1, 0
    %52 = vset.pattern.permute.xlu0 0
    %53 = vperm.xlu0 %52, %v51
    %v54 = vpop.permute.xlu0 %53
    %vm55 = vcmp.eq.s32.totalorder %v54, 1
    %v56 = vlaneseq
    %v57 = vshrl.u32 %v56, 7
    %v58 = vsub.s32 0, %v57
    %v59 = vrot.slane %v50, %v58
    %v60 = vsel %vm55, %v59, %v48
    %vm61 = vcmp.eq.s32.totalorder %v12, 4
    %v62 = vld [vmem:[%s1 + $0x4] sm:$0x1]
    %v63 = vsel %vm61, 1, 0
    %64 = vset.pattern.permute.xlu0 0
    %65 = vperm.xlu0 %64, %v63
    %v66 = vpop.permute.xlu0 %65
    %vm67 = vcmp.eq.s32.totalorder %v66, 1
    %v68 = vlaneseq
    %v69 = vshrl.u32 %v68, 7
    %v70 = vsub.s32 0, %v69
    %v71 = vrot.slane %v62, %v70
    %v72 = vsel %vm67, %v71, %v60
    %vm73 = vcmp.eq.s32.totalorder %v12, 5
    %v74 = vld [vmem:[%s1 + $0x5] sm:$0x1]
    %v75 = vsel %vm73, 1, 0
    %76 = vset.pattern.permute.xlu0 0
    %77 = vperm.xlu0 %76, %v75
    %v78 = vpop.permute.xlu0 %77
    %vm79 = vcmp.eq.s32.totalorder %v78, 1
    %v80 = vlaneseq
    %v81 = vshrl.u32 %v80, 7
    %v82 = vsub.s32 0, %v81
    %v83 = vrot.slane %v74, %v82
    %v84 = vsel %vm79, %v83, %v72
    %vm85 = vcmask 80896
    %86 = vst.msk [vmem:[#allocation2] sm:$0xff] %vm85, %v84
    // Predicated region
    $region10: #{tpu_custom_call.1} parent=1 // pred_check
      _
    $region11: #{tpu_custom_call.1} parent=1 // pred_check_branch
      %88 = sbr.rel (0) target = $region13
    $region12: #{tpu_custom_call.1} parent=1 // pred_region
      %s90 = ssub.s32 128, 128
      %91 = vsyncadd [#allocation3], %s90
      %s93 = sshll.u32 [#allocation2], 4
      %s94 = int_to_ptr.vmem [resolvable:$true] %s93
      %96 = dma.vmem_to_hbm [thread:$0]  %s94, 128, %s2, [#allocation3]
    $region13: #{tpu_custom_call.1} parent=1 // pred_fallthru
      _
    // Predicated region
    $region14: #{tpu_custom_call.1} parent=1 // pred_check
      _
    $region15: #{tpu_custom_call.1} parent=1 // pred_check_branch
      %98 = sbr.rel (0) target = $region17
    $region16: #{tpu_custom_call.1} parent=1 // pred_region
      %99 = dma.done [#allocation3], 128
    $region17: #{tpu_custom_call.1} parent=1 // pred_fallthru
      _
    %100 = vsyncpa [#allocation3], 1

</llo_original>
